<compile_context>
chip_gen: v7x
topology: tpu7x:2x2x1
jax: 0.10.0
libtpu: 0.0.40
codegen_flags: <defaults>
</compile_context>

<pallas_src>
import functools

import jax
import jax.numpy as jnp
from jax.experimental import pallas as pl
from jax.experimental.pallas import tpu as pltpu

LANES = 128
MAX_ROW_TILE = 512        # 512 x 128 int32 = 256 KiB input per grid step
TARGET_GRID_STEPS = 8     # aim for >= 8 grid steps (v7x 2-TC sharding + pipelining)
DIGITS_PER_WORD = 4       # pack 4 byte-sized digits per int32 output word


def _round_up(x, m):
    return ((x + m - 1) // m) * m


def _from_decimal_packed_kernel(max_per_digit, x_ref, out_ref):
    """x_ref: (T, 128) int32 decimals; out_ref: (T, num_words*128) packed digits."""
    num_digits = len(max_per_digit)
    num_words = (num_digits + DIGITS_PER_WORD - 1) // DIGITS_PER_WORD

    q = x_ref[...]
    digits = []
    # Iterative radix decomposition (static unroll over the small digit count):
    #   digit_d = q_d % m_d ; q_{d+1} = q_d // m_d
    # which equals (x // cumprod[d]) % max_per_digit[d] for 0 <= x < prod.
    for d, m in enumerate(max_per_digit):
        if m == 1:
            digits.append(jnp.zeros_like(q))            # q % 1 == 0, q // 1 == q
        elif d == num_digits - 1:
            digits.append(q)                            # q < m for in-range x
        elif (m & (m - 1)) == 0:
            digits.append(q & (m - 1))                  # power-of-two fast path
            q = q >> (m.bit_length() - 1)               # q >= 0: arithmetic shift ok
        else:
            # Floor-divide by the static constant m via f32 multiply-by-reciprocal.
            # f32->int32 truncation == floor for q >= 0 (no jnp.floor needed); a
            # remainder-based +-1 correction reusing one int multiply makes the
            # result exact for 0 <= q < 2^24.
            est = (q.astype(jnp.float32) * (1.0 / m)).astype(jnp.int32)
            r = q - est * m
            over = r >= m
            under = r < 0
            q = jnp.where(over, est + 1, jnp.where(under, est - 1, est))
            digits.append(jnp.where(over, r - m, jnp.where(under, r + m, r)))

    # Pack digits 4-per-int32 word with shift/or: bits [8b, 8b+8) of word w hold
    # digit 4w+b.  Byte 3 relies on int32 wrap-around of `<< 24`; the arithmetic
    # shift + 0xFF mask in the unpack recovers it exactly (covered by a test).
    for w in range(num_words):
        word = digits[DIGITS_PER_WORD * w]
        for b in range(1, DIGITS_PER_WORD):
            d = DIGITS_PER_WORD * w + b
            if d < num_digits:
                word = word | (digits[d] << (8 * b))
        out_ref[:, pl.ds(w * LANES, LANES)] = word


def from_decimal(x, max_per_digit):
    """Pallas implementation of BaseConverter.forward / from_decimal."""
    max_per_digit = tuple(int(m) for m in max_per_digit)
    num_digits = len(max_per_digit)
    num_words = (num_digits + DIGITS_PER_WORD - 1) // DIGITS_PER_WORD

    assert num_digits >= 1
    # TODO(synk): support levels > 256 (digits not fitting one byte) via an unpacked
    # int32 digit layout; FSQ levels are always tiny so the packed path covers usage.
    assert all(1 <= m <= 256 for m in max_per_digit), max_per_digit
    prod = 1
    for m in max_per_digit:
        prod *= m
    # Valid decimal codes lie in [0, prod); the f32-reciprocal floor-division path
    # and the last-digit shortcut are exact on that range provided prod <= 2^24.
    assert prod <= (1 << 24), "codebook too large for f32 floor-division path"

    orig_shape = x.shape
    x_flat = x.reshape(-1).astype(jnp.int32)
    n = x_flat.shape[0]
    if n == 0:
        return jnp.zeros(orig_shape + (num_digits,), jnp.int32)

    # Lane-dense layout (rows, 128).  Pick row_tile so the grid has ~TARGET steps
    # (v7x two-TC sharding + pipelining) while keeping padding waste < one tile.
    rows_raw = (n + LANES - 1) // LANES
    row_tile = min(MAX_ROW_TILE,
                   max(8, _round_up(-(-rows_raw // TARGET_GRID_STEPS), 8)))
    rows = _round_up(rows_raw, row_tile)
    n_pad = rows * LANES
    if n_pad != n:
        x_flat = jnp.pad(x_flat, (0, n_pad - n))
    x2d = x_flat.reshape(rows, LANES)

    packed = pl.pallas_call(
        functools.partial(_from_decimal_packed_kernel, max_per_digit),
        out_shape=jax.ShapeDtypeStruct((rows, num_words * LANES), jnp.int32),
        grid=(rows // row_tile,),
        in_specs=[pl.BlockSpec((row_tile, LANES), lambda i: (i, 0))],
        out_specs=pl.BlockSpec((row_tile, num_words * LANES), lambda i: (i, 0)),
        compiler_params=pltpu.CompilerParams(dimension_semantics=("parallel",)),
    )(x2d)

    # Unpack bytes -> (..., D) int32 with fused elementwise shifts/masks.
    # Arithmetic right shift + 0xFF mask recovers each byte field exactly.
    digit_cols = []
    for d in range(num_digits):
        w, b = divmod(d, DIGITS_PER_WORD)
        col = packed[:, w * LANES:(w + 1) * LANES].reshape(n_pad)[:n]
        digit_cols.append((col >> (8 * b)) & 0xFF)
    digits = jnp.stack(digit_cols, axis=-1)
    return digits.reshape(orig_shape + (num_digits,))


if __name__ == "__main__":
    def _reference(x, max_per_digit):
        mpd = jnp.asarray(max_per_digit, dtype=jnp.int32)
        cumprod = jnp.cumprod(
            jnp.asarray((1,) + tuple(max_per_digit)[:-1], dtype=jnp.int32))
        return (x[..., None] // cumprod) % mpd

    key = jax.random.PRNGKey(0)

    # FSQ-style levels; codebook size = 1000.  Input: decimal indices (batch, h, w).
    max_per_digit = (8, 5, 5, 5)
    num_codes = 8 * 5 * 5 * 5
    x = jax.random.randint(key, (2, 32, 32), 0, num_codes, dtype=jnp.int32)
    out = jax.block_until_ready(from_decimal(x, max_per_digit))
    assert out.shape == x.shape + (4,), out.shape
    assert out.dtype == jnp.int32
    assert bool(jnp.all(out == _reference(x, max_per_digit))), "mismatch (D=4)"

    # 6 digits (two packed words) and a ragged, non-128-multiple size.
    mpd6 = (8, 8, 8, 5, 5, 5)
    nc6 = 8 * 8 * 8 * 5 * 5 * 5
    x2 = jax.random.randint(jax.random.PRNGKey(1), (3, 17), 0, nc6, dtype=jnp.int32)
    out2 = jax.block_until_ready(from_decimal(x2, mpd6))
    assert out2.shape == x2.shape + (6,), out2.shape
    assert bool(jnp.all(out2 == _reference(x2, mpd6))), "mismatch (D=6)"

    # Byte-3 wrap-around coverage: 255-valued digit in the top packed byte, plus the
    # extremes 0 and prod-1 (all digits maximal).
    mpd_b3 = (256, 4, 4, 256)
    nc_b3 = 256 * 4 * 4 * 256
    x3 = jnp.concatenate([
        jax.random.randint(jax.random.PRNGKey(2), (130,), 0, nc_b3, dtype=jnp.int32),
        jnp.array([0, nc_b3 - 1], dtype=jnp.int32),
    ])
    out3 = jax.block_until_ready(from_decimal(x3, mpd_b3))
    assert bool(jnp.all(out3 == _reference(x3, mpd_b3))), "mismatch (byte-3 / 255)"
    assert int(out3[-1, 0]) == 255 and int(out3[-1, 3]) == 255

    print("KERNEL_OK")
</pallas_src>

<mosaic_0001>
module attributes {stable_mosaic.version = 11 : i64} {
  func.func @_from_decimal_packed_kernel(%arg0: i32, %arg1: memref<8x128xi32, #tpu.memory_space<vmem>>, %arg2: memref<8x128xi32, #tpu.memory_space<vmem>>) attributes {dimension_semantics = [#tpu.dimension_semantics<parallel>], iteration_bounds = array<i64: 2>, scalar_prefetch = 0 : i64, scratch_operands = 0 : i64, tpu.core_type = #tpu.core_type<tc>, window_params = [{transform_indices = @transform_0, window_bounds = array<i64: 8, 128>}, {transform_indices = @transform_1, window_bounds = array<i64: 8, 128>}]} {
    %c0 = arith.constant 0 : index
    %c0_0 = arith.constant 0 : index
    %0 = vector.load %arg1[%c0, %c0_0] : memref<8x128xi32, #tpu.memory_space<vmem>>, vector<8x128xi32>
    %c7_i32 = arith.constant 7 : i32
    %1 = vector.broadcast %c7_i32 : i32 to vector<8x128xi32>
    %2 = arith.andi %0, %1 : vector<8x128xi32>
    %c3_i32 = arith.constant 3 : i32
    %3 = vector.broadcast %c3_i32 : i32 to vector<8x128xi32>
    %4 = arith.shrsi %0, %3 : vector<8x128xi32>
    %5 = arith.sitofp %4 : vector<8x128xi32> to vector<8x128xf32>
    %cst = arith.constant 2.000000e-01 : f32
    %6 = vector.broadcast %cst : f32 to vector<8x128xf32>
    %7 = arith.mulf %5, %6 : vector<8x128xf32>
    %8 = arith.fptosi %7 : vector<8x128xf32> to vector<8x128xi32>
    %c5_i32 = arith.constant 5 : i32
    %9 = vector.broadcast %c5_i32 : i32 to vector<8x128xi32>
    %10 = arith.muli %8, %9 : vector<8x128xi32>
    %11 = arith.subi %4, %10 : vector<8x128xi32>
    %c5_i32_1 = arith.constant 5 : i32
    %12 = vector.broadcast %c5_i32_1 : i32 to vector<8x128xi32>
    %13 = arith.cmpi sge, %11, %12 : vector<8x128xi32>
    %c0_i32 = arith.constant 0 : i32
    %14 = vector.broadcast %c0_i32 : i32 to vector<8x128xi32>
    %15 = arith.cmpi slt, %11, %14 : vector<8x128xi32>
    %c1_i32 = arith.constant 1 : i32
    %16 = vector.broadcast %c1_i32 : i32 to vector<8x128xi32>
    %17 = arith.addi %8, %16 : vector<8x128xi32>
    %c1_i32_2 = arith.constant 1 : i32
    %18 = vector.broadcast %c1_i32_2 : i32 to vector<8x128xi32>
    %19 = arith.subi %8, %18 : vector<8x128xi32>
    %20 = arith.select %15, %19, %8 : vector<8x128xi1>, vector<8x128xi32>
    %21 = arith.select %13, %17, %20 : vector<8x128xi1>, vector<8x128xi32>
    %c5_i32_3 = arith.constant 5 : i32
    %22 = vector.broadcast %c5_i32_3 : i32 to vector<8x128xi32>
    %23 = arith.subi %11, %22 : vector<8x128xi32>
    %c5_i32_4 = arith.constant 5 : i32
    %24 = vector.broadcast %c5_i32_4 : i32 to vector<8x128xi32>
    %25 = arith.addi %11, %24 : vector<8x128xi32>
    %26 = arith.select %15, %25, %11 : vector<8x128xi1>, vector<8x128xi32>
    %27 = arith.select %13, %23, %26 : vector<8x128xi1>, vector<8x128xi32>
    %28 = arith.sitofp %21 : vector<8x128xi32> to vector<8x128xf32>
    %cst_5 = arith.constant 2.000000e-01 : f32
    %29 = vector.broadcast %cst_5 : f32 to vector<8x128xf32>
    %30 = arith.mulf %28, %29 : vector<8x128xf32>
    %31 = arith.fptosi %30 : vector<8x128xf32> to vector<8x128xi32>
    %c5_i32_6 = arith.constant 5 : i32
    %32 = vector.broadcast %c5_i32_6 : i32 to vector<8x128xi32>
    %33 = arith.muli %31, %32 : vector<8x128xi32>
    %34 = arith.subi %21, %33 : vector<8x128xi32>
    %c5_i32_7 = arith.constant 5 : i32
    %35 = vector.broadcast %c5_i32_7 : i32 to vector<8x128xi32>
    %36 = arith.cmpi sge, %34, %35 : vector<8x128xi32>
    %c0_i32_8 = arith.constant 0 : i32
    %37 = vector.broadcast %c0_i32_8 : i32 to vector<8x128xi32>
    %38 = arith.cmpi slt, %34, %37 : vector<8x128xi32>
    %c1_i32_9 = arith.constant 1 : i32
    %39 = vector.broadcast %c1_i32_9 : i32 to vector<8x128xi32>
    %40 = arith.addi %31, %39 : vector<8x128xi32>
    %c1_i32_10 = arith.constant 1 : i32
    %41 = vector.broadcast %c1_i32_10 : i32 to vector<8x128xi32>
    %42 = arith.subi %31, %41 : vector<8x128xi32>
    %43 = arith.select %38, %42, %31 : vector<8x128xi1>, vector<8x128xi32>
    %44 = arith.select %36, %40, %43 : vector<8x128xi1>, vector<8x128xi32>
    %c5_i32_11 = arith.constant 5 : i32
    %45 = vector.broadcast %c5_i32_11 : i32 to vector<8x128xi32>
    %46 = arith.subi %34, %45 : vector<8x128xi32>
    %c5_i32_12 = arith.constant 5 : i32
    %47 = vector.broadcast %c5_i32_12 : i32 to vector<8x128xi32>
    %48 = arith.addi %34, %47 : vector<8x128xi32>
    %49 = arith.select %38, %48, %34 : vector<8x128xi1>, vector<8x128xi32>
    %50 = arith.select %36, %46, %49 : vector<8x128xi1>, vector<8x128xi32>
    %c8_i32 = arith.constant 8 : i32
    %51 = vector.broadcast %c8_i32 : i32 to vector<8x128xi32>
    %52 = arith.shli %27, %51 : vector<8x128xi32>
    %53 = arith.ori %2, %52 : vector<8x128xi32>
    %c16_i32 = arith.constant 16 : i32
    %54 = vector.broadcast %c16_i32 : i32 to vector<8x128xi32>
    %55 = arith.shli %50, %54 : vector<8x128xi32>
    %56 = arith.ori %53, %55 : vector<8x128xi32>
    %c24_i32 = arith.constant 24 : i32
    %57 = vector.broadcast %c24_i32 : i32 to vector<8x128xi32>
    %58 = arith.shli %44, %57 : vector<8x128xi32>
    %59 = arith.ori %56, %58 : vector<8x128xi32>
    %c0_13 = arith.constant 0 : index
    %c0_14 = arith.constant 0 : index
    %60 = vector.load %arg2[%c0_13, %c0_14] : memref<8x128xi32, #tpu.memory_space<vmem>>, vector<8x128xi32>
    tpu.vector_store %arg2[%c0_13, %c0_14], %59 {strides = array<i32>} : memref<8x128xi32, #tpu.memory_space<vmem>>, vector<8x128xi32>,
    return
  }
  func.func @transform_0(%arg0: i32) -> (i32, i32) {
    %c0_i32 = arith.constant 0 : i32
    %c0_i32_0 = arith.constant 0 : i32
    return %arg0, %c0_i32 : i32, i32
  }
  func.func @transform_1(%arg0: i32) -> (i32, i32) {
    %c0_i32 = arith.constant 0 : i32
    %c0_i32_0 = arith.constant 0 : i32
    return %arg0, %c0_i32 : i32, i32
  }
}

</mosaic_0001>

<llo_original>
// kernel: tpu_custom_call.1
$region0: #{tpu_custom_call.1}
  #allocation0 [shape = 'u32[]', space=smem, size = 0x4, offset = 0x4, fixed_abs, tag = 'smem constant byte address 0x4 - core index']
  #allocation1 [shape = 'u32[144,128]{1,0:T(1,128)}', space=vmem, size = 0x12000, scoped, tag = 'internal scratch']
  %s0 = inlined_call_operand.hbm [shape: s32[16,128], index: 0, kind: input, shape index: {}]
  %s1 = inlined_call_operand.hbm [shape: s32[16,128], index: 1, kind: output, shape index: {}]
  %s2 = sld [smem:[#allocation0]]
  $region41: #{tpu_custom_call.1} parent=0
    _
  %s4 = ssub.s32 1, %s2
  %s5 = scalar_select 0, %s4, %s2
  $region1: #{tpu_custom_call.1} parent=0
    #allocation2 [shape = 'u8[8192]{0}', space=vmem, size = 0x2000, scoped, tag = 'input window, operand 0']
    #allocation3 [shape = 's32[2]{0}', space=sflag, size = 0x8, scoped, tag = 'scoped memory for tpu_custom_call.1']
    #allocation4 [shape = 's32[2]{0}', space=sflag, size = 0x8, scoped, tag = 'scoped memory for tpu_custom_call.1']
    #allocation5 [shape = 'u8[8192]{0}', space=vmem, size = 0x2000, scoped, tag = 'output window, operand 0']
    %6 = vsyncpa [#allocation3], 0
    %s7 = scalar_lea.sflag [#allocation3], 1
    %8 = vsyncpa %s7, 0
    %9 = vsyncpa [#allocation4], 0
    %s10 = scalar_lea.sflag [#allocation4], 1
    %11 = vsyncpa %s10, 0
    loop: start=0, step=1, limit=4
    $region2: #{tpu_custom_call.1} parent=1 // loop_pre_header
      _
    $region3: #{tpu_custom_call.1} parent=1 // loop_header
      %s13 = sphi 0, %s17
      %p14 = scmp.ge.s32.totalorder %s13, 4
      %s23 = sphi 0, %s25
      %s26 = sphi 0, %s23
      %s27 = sphi 0, %s26
      %s43 = sphi 0, %s27
      %s49 = sphi 0, %s51
      %s52 = sphi 0, %s49
      %s53 = sphi 0, %s52
      %s69 = sphi 0, %s53
    $region4: #{tpu_custom_call.1} parent=1 // loop_header_branch
      %16 = sbr.rel (%p14) target = $region8
    $region5: #{tpu_custom_call.1} parent=1 // loop_body
      %s18 = ssub.s32 %s13, 1
      %s19 = ssub.s32 %s13, 2
      %s20 = sadd.s32 %s13, 1
      %s21 = ssub.s32 %s13, %s20
      %p22 = scmp.eq.s32.totalorder %s21, 0
      %s24 = sadd.s32 %s23, 1
      %s25 = scalar_select %p22, %s23, %s24
      %p28 = pneg %p22
      %p29 = scmp.eq.s32.totalorder %s13, 1
      %p30 = por %p28, %p29
      %p31 = scmp.ne.s32.totalorder %s23, %s26
      %p32 = scmp.eq.s32.totalorder %s13, 0
      %p33 = por %p31, %p32
      %p34 = scmp.ne.s32.totalorder %s23, %s26
      %p35 = scmp.eq.s32.totalorder %s18, 1
      %p36 = por %p34, %p35
      %p37 = scmp.ne.s32.totalorder %s26, %s27
      %p38 = scmp.eq.s32.totalorder %s18, 0
      %p39 = por %p37, %p38
      %p40 = scmp.ne.s32.totalorder %s26, %s27
      %p41 = scmp.eq.s32.totalorder %s19, 1
      %p42 = por %p40, %p41
      %p44 = scmp.ne.s32.totalorder %s27, %s43
      %p45 = scmp.eq.s32.totalorder %s19, 0
      %p46 = por %p44, %p45
      %s47 = ssub.s32 %s13, %s20
      %p48 = scmp.eq.s32.totalorder %s47, 0
      %s50 = sadd.s32 %s49, 1
      %s51 = scalar_select %p48, %s49, %s50
      %p54 = pneg %p48
      %p55 = scmp.eq.s32.totalorder %s13, 1
      %p56 = por %p54, %p55
      %p57 = scmp.ne.s32.totalorder %s49, %s52
      %p58 = scmp.eq.s32.totalorder %s13, 0
      %p59 = por %p57, %p58
      %p60 = scmp.ne.s32.totalorder %s49, %s52
      %p61 = scmp.eq.s32.totalorder %s18, 1
      %p62 = por %p60, %p61
      %p63 = scmp.ne.s32.totalorder %s52, %s53
      %p64 = scmp.eq.s32.totalorder %s18, 0
      %p65 = por %p63, %p64
      %p66 = scmp.ne.s32.totalorder %s52, %s53
      %p67 = scmp.eq.s32.totalorder %s19, 1
      %p68 = por %p66, %p67
      %p70 = scmp.ne.s32.totalorder %s53, %s69
      %p71 = scmp.eq.s32.totalorder %s19, 0
      %p72 = por %p70, %p71
      %p73 = scmp.le.s32.totalorder 1, %s13
      %p74 = scmp.lt.s32.totalorder %s13, 3
      %p75 = pnand %p73, %p74
      %p76 = pneg %p75
      // Predicated region
      $region9: #{tpu_custom_call.1} parent=5 // pred_check
        _
      $region10: #{tpu_custom_call.1} parent=5 // pred_check_branch
        %78 = sbr.rel (%p75) target = $region12
      $region11: #{tpu_custom_call.1} parent=5 // pred_region
        %s79 = ssub.s32 %s13, 1
      $region12: #{tpu_custom_call.1} parent=5 // pred_fallthru
        _
      %p80 = scmp.lt.s32.totalorder %s13, 2
      // Predicated region
      $region13: #{tpu_custom_call.1} parent=5 // pred_check
        %p81 = pneg %p80
      $region14: #{tpu_custom_call.1} parent=5 // pred_check_branch
        %83 = sbr.rel (%p81) target = $region16
      $region15: #{tpu_custom_call.1} parent=5 // pred_region
        // Predicated region
        $region17: #{tpu_custom_call.1} parent=15 // pred_check
          %p84 = pneg %p33
        $region18: #{tpu_custom_call.1} parent=15 // pred_check_branch
          %86 = sbr.rel (%p84) target = $region20
        $region19: #{tpu_custom_call.1} parent=15 // pred_region
          %s87 = sand.u32 %s23, 1
          %s88 = scalar_lea.sflag [#allocation3], %s87
          %s89 = sand.u32 %s23, 1
          %s90 = smul.addr %s89, 8
          %s91 = scalar_lea.vmem [#allocation2], %s90
          %s93 = ssub.s32 128, 128
          %94 = vsyncadd %s88, %s93
          %s95 = smul.addr %s13, 128
          %s96 = scalar_lea.hbm %s0, %s95
          %s98 = sshll.u32 %s91, 4
          %s99 = int_to_ptr.vmem [resolvable:$true] %s98
          %101 = dma.hbm_to_vmem [thread:$0]  %s96, 128, %s99, %s88
        $region20: #{tpu_custom_call.1} parent=15 // pred_fallthru
          _
      $region16: #{tpu_custom_call.1} parent=5 // pred_fallthru
        _
      %p102 = scmp.le.s32.totalorder 1, %s13
      %p103 = scmp.lt.s32.totalorder %s13, 3
      %p104 = pnand %p102, %p103
      %p105 = pneg %p104
      // Predicated region
      $region21: #{tpu_custom_call.1} parent=5 // pred_check
        _
      $region22: #{tpu_custom_call.1} parent=5 // pred_check_branch
        %107 = sbr.rel (%p104) target = $region24
      $region23: #{tpu_custom_call.1} parent=5 // pred_region
        %s108 = ssub.s32 %s13, 1
        %s109 = sand.u32 %s26, 1
        %s110 = scalar_lea.sflag [#allocation3], %s109
        %s111 = sand.u32 %s26, 1
        %s112 = smul.addr %s111, 8
        %s113 = scalar_lea.vmem [#allocation2], %s112
        // Predicated region
        $region25: #{tpu_custom_call.1} parent=23 // pred_check
          %p114 = pneg %p39
        $region26: #{tpu_custom_call.1} parent=23 // pred_check_branch
          %116 = sbr.rel (%p114) target = $region28
        $region27: #{tpu_custom_call.1} parent=23 // pred_region
          %117 = dma.done %s110, 128
        $region28: #{tpu_custom_call.1} parent=23 // pred_fallthru
          _
        %s118 = sand.u32 %s26, 1
        %s119 = scalar_lea.sflag [#allocation3], %s118
        %s120 = sand.u32 %s26, 1
        %s121 = smul.addr %s120, 8
        %s122 = scalar_lea.vmem [#allocation2], %s121
        %p123 = pneg %p39
        %p124 = pneg %p36
        %p125 = pneg %p65
        %p126 = pneg %p62
        %s127 = sand.u32 %s52, 1
        %s128 = scalar_lea.sflag [#allocation4], %s127
        %s129 = sand.u32 %s52, 1
        %s130 = smul.addr %s129, 8
        %s131 = scalar_lea.vmem [#allocation5], %s130
        %v132 = vld [vmem:[%s113] sm:$0xff]
        %v133 = vand.u32 %v132, 7
        %v134 = vshra.s32 %v132, 3
        %v135 = vcvt.s32.f32 %v134
        %v136 = vmul.f32 %v135, 0.2
        %v137 = vcvt.f32.s32.to.zero.pseudo %v136
        %v138 = vmul.u32 %v137, 5
        %v139 = vsub.s32 %v134, %v138
        %vm140 = vcmp.ge.s32.totalorder %v139, 5
        %vm141 = vcmp.lt.s32.totalorder %v139, 0
        %v142 = vadd.s32 %v137, 1
        %v143 = vsub.s32 %v137, 1
        %v144 = vsel %vm141, %v143, %v137
        %v145 = vsel %vm140, %v142, %v144
        %v146 = vsub.s32 %v139, 5
        %v147 = vadd.s32 %v139, 5
        %v148 = vsel %vm141, %v147, %v139
        %v149 = vsel %vm140, %v146, %v148
        %v150 = vcvt.s32.f32 %v145
        %v151 = vmul.f32 %v150, 0.2
        %v152 = vcvt.f32.s32.to.zero.pseudo %v151
        %v153 = vmul.u32 %v152, 5
        %v154 = vsub.s32 %v145, %v153
        %vm155 = vcmp.ge.s32.totalorder %v154, 5
        %vm156 = vcmp.lt.s32.totalorder %v154, 0
        %v157 = vadd.s32 %v152, 1
        %v158 = vsub.s32 %v152, 1
        %v159 = vsel %vm156, %v158, %v152
        %v160 = vsel %vm155, %v157, %v159
        %v161 = vsub.s32 %v154, 5
        %v162 = vadd.s32 %v154, 5
        %v163 = vsel %vm156, %v162, %v154
        %v164 = vsel %vm155, %v161, %v163
        %v165 = vshll.u32 %v149, 8
        %v166 = vor.u32 %v133, %v165
        %v167 = vshll.u32 %v164, 16
        %v168 = vor.u32 %v166, %v167
        %v169 = vshll.u32 %v160, 24
        %v170 = vor.u32 %v168, %v169
        %171 = vst [vmem:[%s131] sm:$0xff] %v170
        %s172 = sand.u32 %s52, 1
        %s173 = scalar_lea.sflag [#allocation4], %s172
        %s174 = sand.u32 %s52, 1
        %s175 = smul.addr %s174, 8
        %s176 = scalar_lea.vmem [#allocation5], %s175
        // Predicated region
        $region29: #{tpu_custom_call.1} parent=23 // pred_check
          %p177 = pneg %p62
        $region30: #{tpu_custom_call.1} parent=23 // pred_check_branch
          %179 = sbr.rel (%p177) target = $region32
        $region31: #{tpu_custom_call.1} parent=23 // pred_region
          %s181 = ssub.s32 128, 128
          %182 = vsyncadd %s173, %s181
          %s183 = smul.addr %s18, 128
          %s184 = scalar_lea.hbm %s1, %s183
          %s186 = sshll.u32 %s176, 4
          %s187 = int_to_ptr.vmem [resolvable:$true] %s186
          %189 = dma.vmem_to_hbm [thread:$0]  %s187, 128, %s184, %s173
        $region32: #{tpu_custom_call.1} parent=23 // pred_fallthru
          _
      $region24: #{tpu_custom_call.1} parent=5 // pred_fallthru
        _
      %p190 = scmp.le.s32.totalorder 2, %s13
      // Predicated region
      $region33: #{tpu_custom_call.1} parent=5 // pred_check
        %p191 = pneg %p190
      $region34: #{tpu_custom_call.1} parent=5 // pred_check_branch
        %193 = sbr.rel (%p191) target = $region36
      $region35: #{tpu_custom_call.1} parent=5 // pred_region
        %s194 = ssub.s32 %s13, 2
        // Predicated region
        $region37: #{tpu_custom_call.1} parent=35 // pred_check
          %p195 = pneg %p68
        $region38: #{tpu_custom_call.1} parent=35 // pred_check_branch
          %197 = sbr.rel (%p195) target = $region40
        $region39: #{tpu_custom_call.1} parent=35 // pred_region
          %s198 = sand.u32 %s53, 1
          %s199 = scalar_lea.sflag [#allocation4], %s198
          %s200 = sand.u32 %s53, 1
          %s201 = smul.addr %s200, 8
          %s202 = scalar_lea.vmem [#allocation5], %s201
          %203 = dma.done %s199, 128
        $region40: #{tpu_custom_call.1} parent=35 // pred_fallthru
          _
      $region36: #{tpu_custom_call.1} parent=5 // pred_fallthru
        _
    $region6: #{tpu_custom_call.1} parent=1 // loop_footer
      %s17 = sadd.s32 1, %s13
    $region7: #{tpu_custom_call.1} parent=1 // loop_footer_branch
      %12 = sbr.rel target = $region3
    $region8: #{tpu_custom_call.1} parent=1 // loop_exit
      _
    %204 = vsyncpa [#allocation3], 1
    %s205 = scalar_lea.sflag [#allocation3], 1
    %206 = vsyncpa %s205, 1
    %207 = vsyncpa [#allocation4], 1
    %s208 = scalar_lea.sflag [#allocation4], 1
    %209 = vsyncpa %s208, 1

</llo_original>
